<compile_context>
chip_gen: v7x
topology: tpu7x:2x2x1
jax: 0.10.0
libtpu: 0.0.40
codegen_flags: <defaults>
</compile_context>

<pallas_src>
import functools

import jax
import jax.numpy as jnp
from jax import lax
from jax.experimental import pallas as pl
from jax.experimental.pallas import tpu as pltpu


def _round_down(x, m):
    return (x // m) * m


# ---------------------------------------------------------------------------
# Main kernel: N = H*W is a multiple of 128 -> (B, C, rows, 128) layout.
# ---------------------------------------------------------------------------
def _dice_sums_kernel(score_ref, target_ref, inter_ref, ysum_ref, zsum_ref, *,
                      n_classes, tile_rows, chunk_rows, acc_rows, k_inner,
                      rows_total, apply_softmax, needs_mask):
    """Per-(batch, tile-chunk, row-tile) partial Dice reductions.

    score_ref : (1, C, tile_rows, 128)   predictions (native dtype)
    target_ref: (1, tile_rows, 128) i32  integer class labels
    out refs  : (1, 1, C, acc_rows, 128) f32, resident across the k axis.
    Grid = (B, P, k_inner); the last axis is the reduction axis.
    """
    p = pl.program_id(1)
    k = pl.program_id(2)

    @pl.when(k == 0)
    def _init():
        inter_ref[...] = jnp.zeros_like(inter_ref)
        ysum_ref[...] = jnp.zeros_like(ysum_ref)
        zsum_ref[...] = jnp.zeros_like(zsum_ref)

    C = n_classes
    n_chunks = tile_rows // chunk_rows
    tile_start = (p * k_inner + k) * tile_rows

    if needs_mask:
        rows_left = jnp.maximum(
            jnp.minimum(rows_total - tile_start, tile_rows), 0)
        full_chunks = rows_left // chunk_rows               # fully valid chunks
        live_chunks = (rows_left + chunk_rows - 1) // chunk_rows
    else:
        full_chunks = n_chunks

    def _fold(x):                    # (chunk_rows,128) -> (acc_rows,128) adds
        if chunk_rows == acc_rows:
            return x
        return jnp.sum(x.reshape(chunk_rows // acc_rows, acc_rows, 128), axis=0)

    def _chunk(j, masked):
        r0 = pl.multiple_of(j * chunk_rows, chunk_rows)
        t = target_ref[0, pl.ds(r0, chunk_rows), :]          # (chunk,128) i32
        if masked:
            row = lax.broadcasted_iota(jnp.int32, (chunk_rows, 128), 0)
            valid = (tile_start + r0 + row) < rows_total
        else:
            valid = None

        def _load(c):
            x = score_ref[0, c, pl.ds(r0, chunk_rows), :].astype(jnp.float32)
            if masked:
                x = jnp.where(valid, x, 0.0)   # select-before-arithmetic
            return x

        def _accum(c, x):
            oh = t == c
            if masked:
                oh = jnp.logical_and(oh, valid)
            inter_ref[0, 0, c] += _fold(jnp.where(oh, x, 0.0))
            ysum_ref[0, 0, c] += _fold(jnp.where(oh, 1.0, 0.0))
            zsum_ref[0, 0, c] += _fold(x * x)

        if apply_softmax:
            xs = [_load(c) for c in range(C)]
            m = xs[0]
            for c in range(1, C):
                m = jnp.maximum(m, xs[c])
            es = [jnp.exp(x - m) for x in xs]
            den = es[0]
            for c in range(1, C):
                den = den + es[c]
            inv = pl.reciprocal(den, approx=False)           # EUP slot
            for c in range(C):
                s = es[c] * inv
                if masked:
                    s = jnp.where(valid, s, 0.0)  # kill 1/C of masked rows
                _accum(c, s)
        else:
            for c in range(C):
                _accum(c, _load(c))

    def _run(lo, hi, masked):
        def body(j, carry):
            _chunk(j, masked)
            return carry
        lax.fori_loop(lo, hi, body, 0)

    _run(0, full_chunks, False)        # common case: no masking at all
    if needs_mask:
        _run(full_chunks, live_chunks, True)   # at most one boundary chunk


# ---------------------------------------------------------------------------
# Flat kernel: ragged N (H*W % 128 != 0) -> (B, C, N) layout, no jnp.pad.
# ---------------------------------------------------------------------------
def _dice_flat_kernel(score_ref, target_ref, inter_ref, ysum_ref, zsum_ref, *,
                      n_classes, tile_elems, chunk_l, n_valid, apply_softmax):
    """score_ref: (1, C, tile_elems); target_ref: (1, 1, tile_elems) i32;
    out refs (1, C, chunk_l) f32, resident across the k axis."""
    k = pl.program_id(1)

    @pl.when(k == 0)
    def _init():
        inter_ref[...] = jnp.zeros_like(inter_ref)
        ysum_ref[...] = jnp.zeros_like(ysum_ref)
        zsum_ref[...] = jnp.zeros_like(zsum_ref)

    C = n_classes
    n_chunks = tile_elems // chunk_l
    cls = lax.broadcasted_iota(jnp.int32, (C, chunk_l), 0)

    def body(j, accs):
        ai, ay, az = accs
        off = pl.multiple_of(j * chunk_l, chunk_l)
        gidx = (k * tile_elems + off
                + lax.broadcasted_iota(jnp.int32, (1, chunk_l), 1))
        valid = gidx < n_valid                               # (1, chunk_l)
        s = score_ref[0, :, pl.ds(off, chunk_l)].astype(jnp.float32)  # (C, L)
        s = jnp.where(valid, s, 0.0)
        if apply_softmax:
            m = jnp.max(s, axis=0, keepdims=True)
            e = jnp.exp(s - m)
            s = e * pl.reciprocal(jnp.sum(e, axis=0, keepdims=True), approx=False)
            s = jnp.where(valid, s, 0.0)
        t = target_ref[0, :, pl.ds(off, chunk_l)]            # (1, chunk_l)
        oh = jnp.logical_and(t == cls, valid)
        ai = ai + jnp.where(oh, s, 0.0)
        ay = ay + jnp.where(oh, 1.0, 0.0)
        az = az + s * s
        return ai, ay, az

    zero = jnp.zeros((C, chunk_l), jnp.float32)
    ai, ay, az = lax.fori_loop(0, n_chunks, body, (zero, zero, zero))
    inter_ref[0] += ai
    ysum_ref[0] += ay
    zsum_ref[0] += az


# ---------------------------------------------------------------------------
# Wrappers.
# ---------------------------------------------------------------------------
_VMEM_LIMIT = 32 * 1024 * 1024


def _dice_sums_tiled(score, tgt, C, softmax, max_tile_bytes, itemsize):
    B, _, N = score.shape
    rows = N // 128
    score = score.reshape(B, C, rows, 128)      # layout-preserving
    tgt = tgt.reshape(B, rows, 128)

    if rows < 8 or rows % 8 != 0:
        # Tiny / odd row count: single full-dim tile, single chunk.
        chunk_rows = tile_rows = acc_rows = rows
        num_tiles = 1
        needs_mask = False
    else:
        chunk_rows = 32 if C <= 4 else (16 if C <= 8 else 8)
        chunk_rows = min(chunk_rows, rows)       # rows is a multiple of 8 here
        acc_rows = 8
        per_row_bytes = C * 128 * itemsize + 128 * 4       # score + target
        budget_rows = max(chunk_rows,
                          _round_down(max_tile_bytes // per_row_bytes,
                                      chunk_rows))
        tile_rows = min(budget_rows,
                        max(chunk_rows, _round_down(rows, chunk_rows)))
        num_tiles = pl.cdiv(rows, tile_rows)
        needs_mask = (num_tiles * tile_rows != rows)

    # Give v7x's second TensorCore work when the batch axis is trivial.
    P = 2 if (B == 1 and num_tiles >= 2 and num_tiles % 2 == 0) else 1
    k_inner = num_tiles // P

    kernel = functools.partial(
        _dice_sums_kernel,
        n_classes=C, tile_rows=tile_rows, chunk_rows=chunk_rows,
        acc_rows=acc_rows, k_inner=k_inner, rows_total=rows,
        apply_softmax=softmax, needs_mask=needs_mask)

    acc_sds = jax.ShapeDtypeStruct((B, P, C, acc_rows, 128), jnp.float32)
    acc_spec = pl.BlockSpec((1, 1, C, acc_rows, 128),
                            lambda b, p, k: (b, p, 0, 0, 0))
    cost = pl.CostEstimate(
        flops=int(10 * B * C * N),
        transcendentals=int(B * C * N) if softmax else 0,
        bytes_accessed=int(B * C * N * itemsize + B * N * 4
                           + 3 * B * P * C * acc_rows * 128 * 4))

    inter_p, ysum_p, zsum_p = pl.pallas_call(
        kernel,
        out_shape=(acc_sds, acc_sds, acc_sds),
        grid_spec=pltpu.PrefetchScalarGridSpec(
            num_scalar_prefetch=0,
            grid=(B, P, k_inner),                 # reduction axis last
            in_specs=[
                pl.BlockSpec((1, C, tile_rows, 128),
                             lambda b, p, k: (b, 0, p * k_inner + k, 0)),
                pl.BlockSpec((1, tile_rows, 128),
                             lambda b, p, k: (b, p * k_inner + k, 0)),
            ],
            out_specs=[acc_spec, acc_spec, acc_spec]),
        compiler_params=pltpu.CompilerParams(
            dimension_semantics=("parallel", "parallel", "arbitrary"),
            vmem_limit_bytes=_VMEM_LIMIT),
        cost_estimate=cost,
    )(score, tgt)

    intersect = jnp.sum(inter_p, axis=(0, 1, 3, 4))
    y_sum = jnp.sum(ysum_p, axis=(0, 1, 3, 4))
    z_sum = jnp.sum(zsum_p, axis=(0, 1, 3, 4))
    return intersect, y_sum, z_sum


def _dice_sums_flat(score, tgt, C, softmax, max_tile_bytes, itemsize):
    B, _, N = score.shape
    tgt = tgt.reshape(B, 1, N)

    if N < 512:
        tile_elems = chunk_l = N                 # full-dim single tile
        num_tiles = 1
    else:
        chunk_l = 512
        per_elem = C * itemsize + 4
        budget = max(chunk_l,
                     _round_down(max_tile_bytes // per_elem, chunk_l))
        tile_elems = min(budget, max(chunk_l, _round_down(N, chunk_l)))
        num_tiles = pl.cdiv(N, tile_elems)

    kernel = functools.partial(
        _dice_flat_kernel,
        n_classes=C, tile_elems=tile_elems, chunk_l=chunk_l, n_valid=N,
        apply_softmax=softmax)

    acc_sds = jax.ShapeDtypeStruct((B, C, chunk_l), jnp.float32)
    acc_spec = pl.BlockSpec((1, C, chunk_l), lambda b, k: (b, 0, 0))
    cost = pl.CostEstimate(
        flops=int(10 * B * C * N),
        transcendentals=int(B * C * N) if softmax else 0,
        bytes_accessed=int(B * C * N * itemsize + B * N * 4
                           + 3 * B * C * chunk_l * 4))

    inter_p, ysum_p, zsum_p = pl.pallas_call(
        kernel,
        out_shape=(acc_sds, acc_sds, acc_sds),
        grid_spec=pltpu.PrefetchScalarGridSpec(
            num_scalar_prefetch=0,
            grid=(B, num_tiles),
            in_specs=[
                pl.BlockSpec((1, C, tile_elems), lambda b, k: (b, 0, k)),
                pl.BlockSpec((1, 1, tile_elems), lambda b, k: (b, 0, k)),
            ],
            out_specs=[acc_spec, acc_spec, acc_spec]),
        compiler_params=pltpu.CompilerParams(
            dimension_semantics=("parallel", "arbitrary"),
            vmem_limit_bytes=_VMEM_LIMIT),
        cost_estimate=cost,
    )(score, tgt)

    intersect = jnp.sum(inter_p, axis=(0, 2))
    y_sum = jnp.sum(ysum_p, axis=(0, 2))
    z_sum = jnp.sum(zsum_p, axis=(0, 2))
    return intersect, y_sum, z_sum


@functools.partial(jax.jit,
                   static_argnames=("n_classes", "softmax", "max_tile_bytes"))
def dice_loss(inputs, target, weight=None, n_classes=1, softmax=False,
              max_tile_bytes=4 * 1024 * 1024):
    """Matches DiceLoss.forward semantics.

    inputs : (B, C, H, W) float (C == n_classes)
    target : (B, H, W) integer class labels
    weight : optional per-class weights (defaults to all-ones)
    Returns a scalar float32 loss.
    """
    B, C, H, W = inputs.shape
    assert C == n_classes, "channel dim must equal n_classes"
    N = H * W

    score = inputs.reshape(B, C, N)              # free, layout-preserving
    tgt = target.astype(jnp.int32).reshape(B, N)
    itemsize = jnp.dtype(score.dtype).itemsize

    if N % 128 == 0:
        intersect, y_sum, z_sum = _dice_sums_tiled(
            score, tgt, C, bool(softmax), max_tile_bytes, itemsize)
    else:
        intersect, y_sum, z_sum = _dice_sums_flat(
            score, tgt, C, bool(softmax), max_tile_bytes, itemsize)

    smooth = 1e-05
    dice = 1.0 - (2.0 * intersect + smooth) / (z_sum + y_sum + smooth)

    if weight is None:
        w = jnp.ones((C,), dtype=jnp.float32)
    else:
        w = jnp.asarray(weight, dtype=jnp.float32)
    return jnp.sum(dice * w) / n_classes


# ---------------------------------------------------------------------------
# Reference + self-test.
# ---------------------------------------------------------------------------
def _reference_dice_loss(inputs, target, n_classes, weight=None, softmax=False):
    """Pure-JAX reference mirroring the PyTorch module."""
    if softmax:
        inputs = jax.nn.softmax(inputs, axis=1)
    if weight is None:
        weight = [1.0] * n_classes
    smooth = 1e-05
    loss = 0.0
    for i in range(n_classes):
        score = inputs[:, i].astype(jnp.float32)
        t = (target == i).astype(jnp.float32)
        intersect = jnp.sum(score * t)
        y_sum = jnp.sum(t * t)
        z_sum = jnp.sum(score * score)
        dice = 1.0 - (2.0 * intersect + smooth) / (z_sum + y_sum + smooth)
        loss = loss + dice * weight[i]
    return loss / n_classes


if __name__ == "__main__":
    key = jax.random.PRNGKey(0)

    def _check(B, C, H, W, softmax, weight=None,
               max_tile_bytes=4 * 1024 * 1024):
        k1, k2 = jax.random.split(
            jax.random.fold_in(key, B * 100003 + C * 1009 + H * 7 + int(softmax)))
        inputs = jax.random.uniform(k1, (B, C, H, W), dtype=jnp.float32,
                                    minval=-2.0, maxval=2.0)
        target = jax.random.randint(k2, (B, H, W), 0, C, dtype=jnp.int32)
        got = jax.block_until_ready(
            dice_loss(inputs, target, weight=weight, n_classes=C,
                      softmax=softmax, max_tile_bytes=max_tile_bytes))
        ref = jax.block_until_ready(
            _reference_dice_loss(inputs, target, n_classes=C, weight=weight,
                                 softmax=softmax))
        assert jnp.allclose(got, ref, rtol=2e-5, atol=1e-5), \
            (B, C, H, W, softmax, got, ref)

    _check(2, 4, 16, 16, False)                       # primary shape
    _check(2, 4, 16, 16, True)                        # fused in-kernel softmax
    _check(1, 3, 20, 20, True)                        # ragged N -> flat kernel
    _check(1, 2, 40, 40, False)                       # ragged N, multi-tile + mask
    _check(1, 4, 288, 288, True)                      # big: 2 tiles, mask, 2-way split
    _check(1, 4, 96, 96, False, max_tile_bytes=1 << 16)   # 3 tiles, masked tail tile
    _check(1, 2, 128, 128, True, max_tile_bytes=1 << 15)  # parallel split + k_inner=2
    _check(2, 5, 32, 36, False, weight=(0.5, 1.5, 1.0, 2.0, 0.25))  # odd rows + weights
    print("KERNEL_OK")
</pallas_src>

<mosaic_0001>
module attributes {stable_mosaic.version = 11 : i64} {
  func.func @_dice_sums_kernel(%arg0: i32, %arg1: i32, %arg2: i32, %arg3: memref<1x4x2x128xf32, #tpu.memory_space<vmem>>, %arg4: memref<1x2x128xi32, #tpu.memory_space<vmem>>, %arg5: memref<1x1x4x2x128xf32, #tpu.memory_space<vmem>>, %arg6: memref<1x1x4x2x128xf32, #tpu.memory_space<vmem>>, %arg7: memref<1x1x4x2x128xf32, #tpu.memory_space<vmem>>) attributes {dimension_semantics = [#tpu.dimension_semantics<parallel>, #tpu.dimension_semantics<parallel>, #tpu.dimension_semantics<arbitrary>], iteration_bounds = array<i64: 2, 1, 1>, scalar_prefetch = 0 : i64, scratch_operands = 0 : i64, tpu.core_type = #tpu.core_type<tc>, window_params = [{transform_indices = @transform_0, window_bounds = array<i64: 1, 4, 2, 128>}, {transform_indices = @transform_1, window_bounds = array<i64: 1, 2, 128>}, {transform_indices = @transform_2, window_bounds = array<i64: 1, 1, 4, 2, 128>}, {transform_indices = @transform_3, window_bounds = array<i64: 1, 1, 4, 2, 128>}, {transform_indices = @transform_4, window_bounds = array<i64: 1, 1, 4, 2, 128>}]} {
    %c0_i32 = arith.constant 0 : i32
    %0 = arith.cmpi eq, %arg2, %c0_i32 : i32
    %1 = arith.extui %0 : i1 to i32
    %c0_i32_0 = arith.constant 0 : i32
    %2 = arith.cmpi ne, %1, %c0_i32_0 : i32
    scf.if %2 {
      %cst_146 = arith.constant 0.000000e+00 : f32
      %124 = vector.broadcast %cst_146 : f32 to vector<1x1x4x2x128xf32>
      %c0_147 = arith.constant 0 : index
      %c0_148 = arith.constant 0 : index
      %c0_149 = arith.constant 0 : index
      %c0_150 = arith.constant 0 : index
      %c0_151 = arith.constant 0 : index
      %125 = vector.load %arg5[%c0_147, %c0_148, %c0_149, %c0_150, %c0_151] : memref<1x1x4x2x128xf32, #tpu.memory_space<vmem>>, vector<1x1x4x2x128xf32>
      tpu.vector_store %arg5[%c0_147, %c0_148, %c0_149, %c0_150, %c0_151], %124 {strides = array<i32>} : memref<1x1x4x2x128xf32, #tpu.memory_space<vmem>>, vector<1x1x4x2x128xf32>,
      %cst_152 = arith.constant 0.000000e+00 : f32
      %126 = vector.broadcast %cst_152 : f32 to vector<1x1x4x2x128xf32>
      %c0_153 = arith.constant 0 : index
      %c0_154 = arith.constant 0 : index
      %c0_155 = arith.constant 0 : index
      %c0_156 = arith.constant 0 : index
      %c0_157 = arith.constant 0 : index
      %127 = vector.load %arg6[%c0_153, %c0_154, %c0_155, %c0_156, %c0_157] : memref<1x1x4x2x128xf32, #tpu.memory_space<vmem>>, vector<1x1x4x2x128xf32>
      tpu.vector_store %arg6[%c0_153, %c0_154, %c0_155, %c0_156, %c0_157], %126 {strides = array<i32>} : memref<1x1x4x2x128xf32, #tpu.memory_space<vmem>>, vector<1x1x4x2x128xf32>,
      %cst_158 = arith.constant 0.000000e+00 : f32
      %128 = vector.broadcast %cst_158 : f32 to vector<1x1x4x2x128xf32>
      %c0_159 = arith.constant 0 : index
      %c0_160 = arith.constant 0 : index
      %c0_161 = arith.constant 0 : index
      %c0_162 = arith.constant 0 : index
      %c0_163 = arith.constant 0 : index
      %129 = vector.load %arg7[%c0_159, %c0_160, %c0_161, %c0_162, %c0_163] : memref<1x1x4x2x128xf32, #tpu.memory_space<vmem>>, vector<1x1x4x2x128xf32>
      tpu.vector_store %arg7[%c0_159, %c0_160, %c0_161, %c0_162, %c0_163], %128 {strides = array<i32>} : memref<1x1x4x2x128xf32, #tpu.memory_space<vmem>>, vector<1x1x4x2x128xf32>,
    } else {
    }
    %c0_i32_1 = arith.constant 0 : i32
    %c2_i32 = arith.constant 2 : i32
    %3 = arith.muli %c0_i32_1, %c2_i32 : i32
    %4 = tpu.assume_multiple %3, 2 : i32
    %c0 = arith.constant 0 : index
    %5 = arith.index_cast %4 : i32 to index
    %c0_2 = arith.constant 0 : index
    %6 = vector.load %arg4[%c0, %5, %c0_2] : memref<1x2x128xi32, #tpu.memory_space<vmem>>, vector<1x2x128xi32>
    %7 = vector.shape_cast %6 : vector<1x2x128xi32> to vector<2x128xi32>
    %c0_3 = arith.constant 0 : index
    %c0_4 = arith.constant 0 : index
    %8 = arith.index_cast %4 : i32 to index
    %c0_5 = arith.constant 0 : index
    %9 = vector.load %arg3[%c0_3, %c0_4, %8, %c0_5] : memref<1x4x2x128xf32, #tpu.memory_space<vmem>>, vector<1x1x2x128xf32>
    %10 = vector.shape_cast %9 : vector<1x1x2x128xf32> to vector<2x128xf32>
    %c0_i32_6 = arith.constant 0 : i32
    %11 = vector.broadcast %c0_i32_6 : i32 to vector<2x128xi32>
    %12 = arith.cmpi eq, %7, %11 : vector<2x128xi32>
    %c0_7 = arith.constant 0 : index
    %c0_8 = arith.constant 0 : index
    %c0_9 = arith.constant 0 : index
    %c0_10 = arith.constant 0 : index
    %c0_11 = arith.constant 0 : index
    %13 = vector.load %arg5[%c0_7, %c0_8, %c0_9, %c0_10, %c0_11] : memref<1x1x4x2x128xf32, #tpu.memory_space<vmem>>, vector<1x1x1x2x128xf32>
    %14 = vector.shape_cast %13 : vector<1x1x1x2x128xf32> to vector<2x128xf32>
    %cst = arith.constant 0.000000e+00 : f32
    %15 = vector.broadcast %cst : f32 to vector<2x128xf32>
    %16 = arith.select %12, %10, %15 : vector<2x128xi1>, vector<2x128xf32>
    %17 = arith.addf %14, %16 : vector<2x128xf32>
    %c0_12 = arith.constant 0 : index
    %c0_13 = arith.constant 0 : index
    %c0_14 = arith.constant 0 : index
    %c0_15 = arith.constant 0 : index
    %c0_16 = arith.constant 0 : index
    %18 = vector.load %arg5[%c0_12, %c0_13, %c0_14, %c0_15, %c0_16] : memref<1x1x4x2x128xf32, #tpu.memory_space<vmem>>, vector<1x1x1x2x128xf32>
    %19 = vector.shape_cast %18 : vector<1x1x1x2x128xf32> to vector<2x128xf32>
    %20 = vector.shape_cast %17 : vector<2x128xf32> to vector<1x1x1x2x128xf32>
    tpu.vector_store %arg5[%c0_12, %c0_13, %c0_14, %c0_15, %c0_16], %20 {strides = array<i32>} : memref<1x1x4x2x128xf32, #tpu.memory_space<vmem>>, vector<1x1x1x2x128xf32>,
    %c0_17 = arith.constant 0 : index
    %c0_18 = arith.constant 0 : index
    %c0_19 = arith.constant 0 : index
    %c0_20 = arith.constant 0 : index
    %c0_21 = arith.constant 0 : index
    %21 = vector.load %arg6[%c0_17, %c0_18, %c0_19, %c0_20, %c0_21] : memref<1x1x4x2x128xf32, #tpu.memory_space<vmem>>, vector<1x1x1x2x128xf32>
    %22 = vector.shape_cast %21 : vector<1x1x1x2x128xf32> to vector<2x128xf32>
    %cst_22 = arith.constant 1.000000e+00 : f32
    %cst_23 = arith.constant 0.000000e+00 : f32
    %23 = vector.broadcast %cst_22 : f32 to vector<2x128xf32>
    %24 = vector.broadcast %cst_23 : f32 to vector<2x128xf32>
    %25 = arith.select %12, %23, %24 : vector<2x128xi1>, vector<2x128xf32>
    %26 = arith.addf %22, %25 : vector<2x128xf32>
    %c0_24 = arith.constant 0 : index
    %c0_25 = arith.constant 0 : index
    %c0_26 = arith.constant 0 : index
    %c0_27 = arith.constant 0 : index
    %c0_28 = arith.constant 0 : index
    %27 = vector.load %arg6[%c0_24, %c0_25, %c0_26, %c0_27, %c0_28] : memref<1x1x4x2x128xf32, #tpu.memory_space<vmem>>, vector<1x1x1x2x128xf32>
    %28 = vector.shape_cast %27 : vector<1x1x1x2x128xf32> to vector<2x128xf32>
    %29 = vector.shape_cast %26 : vector<2x128xf32> to vector<1x1x1x2x128xf32>
    tpu.vector_store %arg6[%c0_24, %c0_25, %c0_26, %c0_27, %c0_28], %29 {strides = array<i32>} : memref<1x1x4x2x128xf32, #tpu.memory_space<vmem>>, vector<1x1x1x2x128xf32>,
    %c0_29 = arith.constant 0 : index
    %c0_30 = arith.constant 0 : index
    %c0_31 = arith.constant 0 : index
    %c0_32 = arith.constant 0 : index
    %c0_33 = arith.constant 0 : index
    %30 = vector.load %arg7[%c0_29, %c0_30, %c0_31, %c0_32, %c0_33] : memref<1x1x4x2x128xf32, #tpu.memory_space<vmem>>, vector<1x1x1x2x128xf32>
    %31 = vector.shape_cast %30 : vector<1x1x1x2x128xf32> to vector<2x128xf32>
    %32 = arith.mulf %10, %10 : vector<2x128xf32>
    %33 = arith.addf %31, %32 : vector<2x128xf32>
    %c0_34 = arith.constant 0 : index
    %c0_35 = arith.constant 0 : index
    %c0_36 = arith.constant 0 : index
    %c0_37 = arith.constant 0 : index
    %c0_38 = arith.constant 0 : index
    %34 = vector.load %arg7[%c0_34, %c0_35, %c0_36, %c0_37, %c0_38] : memref<1x1x4x2x128xf32, #tpu.memory_space<vmem>>, vector<1x1x1x2x128xf32>
    %35 = vector.shape_cast %34 : vector<1x1x1x2x128xf32> to vector<2x128xf32>
    %36 = vector.shape_cast %33 : vector<2x128xf32> to vector<1x1x1x2x128xf32>
    tpu.vector_store %arg7[%c0_34, %c0_35, %c0_36, %c0_37, %c0_38], %36 {strides = array<i32>} : memref<1x1x4x2x128xf32, #tpu.memory_space<vmem>>, vector<1x1x1x2x128xf32>,
    %c0_39 = arith.constant 0 : index
    %c1 = arith.constant 1 : index
    %37 = arith.index_cast %4 : i32 to index
    %c0_40 = arith.constant 0 : index
    %38 = vector.load %arg3[%c0_39, %c1, %37, %c0_40] : memref<1x4x2x128xf32, #tpu.memory_space<vmem>>, vector<1x1x2x128xf32>
    %39 = vector.shape_cast %38 : vector<1x1x2x128xf32> to vector<2x128xf32>
    %c1_i32 = arith.constant 1 : i32
    %40 = vector.broadcast %c1_i32 : i32 to vector<2x128xi32>
    %41 = arith.cmpi eq, %7, %40 : vector<2x128xi32>
    %c0_41 = arith.constant 0 : index
    %c0_42 = arith.constant 0 : index
    %c1_43 = arith.constant 1 : index
    %c0_44 = arith.constant 0 : index
    %c0_45 = arith.constant 0 : index
    %42 = vector.load %arg5[%c0_41, %c0_42, %c1_43, %c0_44, %c0_45] : memref<1x1x4x2x128xf32, #tpu.memory_space<vmem>>, vector<1x1x1x2x128xf32>
    %43 = vector.shape_cast %42 : vector<1x1x1x2x128xf32> to vector<2x128xf32>
    %cst_46 = arith.constant 0.000000e+00 : f32
    %44 = vector.broadcast %cst_46 : f32 to vector<2x128xf32>
    %45 = arith.select %41, %39, %44 : vector<2x128xi1>, vector<2x128xf32>
    %46 = arith.addf %43, %45 : vector<2x128xf32>
    %c0_47 = arith.constant 0 : index
    %c0_48 = arith.constant 0 : index
    %c1_49 = arith.constant 1 : index
    %c0_50 = arith.constant 0 : index
    %c0_51 = arith.constant 0 : index
    %47 = vector.load %arg5[%c0_47, %c0_48, %c1_49, %c0_50, %c0_51] : memref<1x1x4x2x128xf32, #tpu.memory_space<vmem>>, vector<1x1x1x2x128xf32>
    %48 = vector.shape_cast %47 : vector<1x1x1x2x128xf32> to vector<2x128xf32>
    %49 = vector.shape_cast %46 : vector<2x128xf32> to vector<1x1x1x2x128xf32>
    tpu.vector_store %arg5[%c0_47, %c0_48, %c1_49, %c0_50, %c0_51], %49 {strides = array<i32>} : memref<1x1x4x2x128xf32, #tpu.memory_space<vmem>>, vector<1x1x1x2x128xf32>,
    %c0_52 = arith.constant 0 : index
    %c0_53 = arith.constant 0 : index
    %c1_54 = arith.constant 1 : index
    %c0_55 = arith.constant 0 : index
    %c0_56 = arith.constant 0 : index
    %50 = vector.load %arg6[%c0_52, %c0_53, %c1_54, %c0_55, %c0_56] : memref<1x1x4x2x128xf32, #tpu.memory_space<vmem>>, vector<1x1x1x2x128xf32>
    %51 = vector.shape_cast %50 : vector<1x1x1x2x128xf32> to vector<2x128xf32>
    %cst_57 = arith.constant 1.000000e+00 : f32
    %cst_58 = arith.constant 0.000000e+00 : f32
    %52 = vector.broadcast %cst_57 : f32 to vector<2x128xf32>
    %53 = vector.broadcast %cst_58 : f32 to vector<2x128xf32>
    %54 = arith.select %41, %52, %53 : vector<2x128xi1>, vector<2x128xf32>
    %55 = arith.addf %51, %54 : vector<2x128xf32>
    %c0_59 = arith.constant 0 : index
    %c0_60 = arith.constant 0 : index
    %c1_61 = arith.constant 1 : index
    %c0_62 = arith.constant 0 : index
    %c0_63 = arith.constant 0 : index
    %56 = vector.load %arg6[%c0_59, %c0_60, %c1_61, %c0_62, %c0_63] : memref<1x1x4x2x128xf32, #tpu.memory_space<vmem>>, vector<1x1x1x2x128xf32>
    %57 = vector.shape_cast %56 : vector<1x1x1x2x128xf32> to vector<2x128xf32>
    %58 = vector.shape_cast %55 : vector<2x128xf32> to vector<1x1x1x2x128xf32>
    tpu.vector_store %arg6[%c0_59, %c0_60, %c1_61, %c0_62, %c0_63], %58 {strides = array<i32>} : memref<1x1x4x2x128xf32, #tpu.memory_space<vmem>>, vector<1x1x1x2x128xf32>,
    %c0_64 = arith.constant 0 : index
    %c0_65 = arith.constant 0 : index
    %c1_66 = arith.constant 1 : index
    %c0_67 = arith.constant 0 : index
    %c0_68 = arith.constant 0 : index
    %59 = vector.load %arg7[%c0_64, %c0_65, %c1_66, %c0_67, %c0_68] : memref<1x1x4x2x128xf32, #tpu.memory_space<vmem>>, vector<1x1x1x2x128xf32>
    %60 = vector.shape_cast %59 : vector<1x1x1x2x128xf32> to vector<2x128xf32>
    %61 = arith.mulf %39, %39 : vector<2x128xf32>
    %62 = arith.addf %60, %61 : vector<2x128xf32>
    %c0_69 = arith.constant 0 : index
    %c0_70 = arith.constant 0 : index
    %c1_71 = arith.constant 1 : index
    %c0_72 = arith.constant 0 : index
    %c0_73 = arith.constant 0 : index
    %63 = vector.load %arg7[%c0_69, %c0_70, %c1_71, %c0_72, %c0_73] : memref<1x1x4x2x128xf32, #tpu.memory_space<vmem>>, vector<1x1x1x2x128xf32>
    %64 = vector.shape_cast %63 : vector<1x1x1x2x128xf32> to vector<2x128xf32>
    %65 = vector.shape_cast %62 : vector<2x128xf32> to vector<1x1x1x2x128xf32>
    tpu.vector_store %arg7[%c0_69, %c0_70, %c1_71, %c0_72, %c0_73], %65 {strides = array<i32>} : memref<1x1x4x2x128xf32, #tpu.memory_space<vmem>>, vector<1x1x1x2x128xf32>,
    %c0_74 = arith.constant 0 : index
    %c2 = arith.constant 2 : index
    %66 = arith.index_cast %4 : i32 to index
    %c0_75 = arith.constant 0 : index
    %67 = vector.load %arg3[%c0_74, %c2, %66, %c0_75] : memref<1x4x2x128xf32, #tpu.memory_space<vmem>>, vector<1x1x2x128xf32>
    %68 = vector.shape_cast %67 : vector<1x1x2x128xf32> to vector<2x128xf32>
    %c2_i32_76 = arith.constant 2 : i32
    %69 = vector.broadcast %c2_i32_76 : i32 to vector<2x128xi32>
    %70 = arith.cmpi eq, %7, %69 : vector<2x128xi32>
    %c0_77 = arith.constant 0 : index
    %c0_78 = arith.constant 0 : index
    %c2_79 = arith.constant 2 : index
    %c0_80 = arith.constant 0 : index
    %c0_81 = arith.constant 0 : index
    %71 = vector.load %arg5[%c0_77, %c0_78, %c2_79, %c0_80, %c0_81] : memref<1x1x4x2x128xf32, #tpu.memory_space<vmem>>, vector<1x1x1x2x128xf32>
    %72 = vector.shape_cast %71 : vector<1x1x1x2x128xf32> to vector<2x128xf32>
    %cst_82 = arith.constant 0.000000e+00 : f32
    %73 = vector.broadcast %cst_82 : f32 to vector<2x128xf32>
    %74 = arith.select %70, %68, %73 : vector<2x128xi1>, vector<2x128xf32>
    %75 = arith.addf %72, %74 : vector<2x128xf32>
    %c0_83 = arith.constant 0 : index
    %c0_84 = arith.constant 0 : index
    %c2_85 = arith.constant 2 : index
    %c0_86 = arith.constant 0 : index
    %c0_87 = arith.constant 0 : index
    %76 = vector.load %arg5[%c0_83, %c0_84, %c2_85, %c0_86, %c0_87] : memref<1x1x4x2x128xf32, #tpu.memory_space<vmem>>, vector<1x1x1x2x128xf32>
    %77 = vector.shape_cast %76 : vector<1x1x1x2x128xf32> to vector<2x128xf32>
    %78 = vector.shape_cast %75 : vector<2x128xf32> to vector<1x1x1x2x128xf32>
    tpu.vector_store %arg5[%c0_83, %c0_84, %c2_85, %c0_86, %c0_87], %78 {strides = array<i32>} : memref<1x1x4x2x128xf32, #tpu.memory_space<vmem>>, vector<1x1x1x2x128xf32>,
    %c0_88 = arith.constant 0 : index
    %c0_89 = arith.constant 0 : index
    %c2_90 = arith.constant 2 : index
    %c0_91 = arith.constant 0 : index
    %c0_92 = arith.constant 0 : index
    %79 = vector.load %arg6[%c0_88, %c0_89, %c2_90, %c0_91, %c0_92] : memref<1x1x4x2x128xf32, #tpu.memory_space<vmem>>, vector<1x1x1x2x128xf32>
    %80 = vector.shape_cast %79 : vector<1x1x1x2x128xf32> to vector<2x128xf32>
    %cst_93 = arith.constant 1.000000e+00 : f32
    %cst_94 = arith.constant 0.000000e+00 : f32
    %81 = vector.broadcast %cst_93 : f32 to vector<2x128xf32>
    %82 = vector.broadcast %cst_94 : f32 to vector<2x128xf32>
    %83 = arith.select %70, %81, %82 : vector<2x128xi1>, vector<2x128xf32>
    %84 = arith.addf %80, %83 : vector<2x128xf32>
    %c0_95 = arith.constant 0 : index
    %c0_96 = arith.constant 0 : index
    %c2_97 = arith.constant 2 : index
    %c0_98 = arith.constant 0 : index
    %c0_99 = arith.constant 0 : index
    %85 = vector.load %arg6[%c0_95, %c0_96, %c2_97, %c0_98, %c0_99] : memref<1x1x4x2x128xf32, #tpu.memory_space<vmem>>, vector<1x1x1x2x128xf32>
    %86 = vector.shape_cast %85 : vector<1x1x1x2x128xf32> to vector<2x128xf32>
    %87 = vector.shape_cast %84 : vector<2x128xf32> to vector<1x1x1x2x128xf32>
    tpu.vector_store %arg6[%c0_95, %c0_96, %c2_97, %c0_98, %c0_99], %87 {strides = array<i32>} : memref<1x1x4x2x128xf32, #tpu.memory_space<vmem>>, vector<1x1x1x2x128xf32>,
    %c0_100 = arith.constant 0 : index
    %c0_101 = arith.constant 0 : index
    %c2_102 = arith.constant 2 : index
    %c0_103 = arith.constant 0 : index
    %c0_104 = arith.constant 0 : index
    %88 = vector.load %arg7[%c0_100, %c0_101, %c2_102, %c0_103, %c0_104] : memref<1x1x4x2x128xf32, #tpu.memory_space<vmem>>, vector<1x1x1x2x128xf32>
    %89 = vector.shape_cast %88 : vector<1x1x1x2x128xf32> to vector<2x128xf32>
    %90 = arith.mulf %68, %68 : vector<2x128xf32>
    %91 = arith.addf %89, %90 : vector<2x128xf32>
    %c0_105 = arith.constant 0 : index
    %c0_106 = arith.constant 0 : index
    %c2_107 = arith.constant 2 : index
    %c0_108 = arith.constant 0 : index
    %c0_109 = arith.constant 0 : index
    %92 = vector.load %arg7[%c0_105, %c0_106, %c2_107, %c0_108, %c0_109] : memref<1x1x4x2x128xf32, #tpu.memory_space<vmem>>, vector<1x1x1x2x128xf32>
    %93 = vector.shape_cast %92 : vector<1x1x1x2x128xf32> to vector<2x128xf32>
    %94 = vector.shape_cast %91 : vector<2x128xf32> to vector<1x1x1x2x128xf32>
    tpu.vector_store %arg7[%c0_105, %c0_106, %c2_107, %c0_108, %c0_109], %94 {strides = array<i32>} : memref<1x1x4x2x128xf32, #tpu.memory_space<vmem>>, vector<1x1x1x2x128xf32>,
    %c0_110 = arith.constant 0 : index
    %c3 = arith.constant 3 : index
    %95 = arith.index_cast %4 : i32 to index
    %c0_111 = arith.constant 0 : index
    %96 = vector.load %arg3[%c0_110, %c3, %95, %c0_111] : memref<1x4x2x128xf32, #tpu.memory_space<vmem>>, vector<1x1x2x128xf32>
    %97 = vector.shape_cast %96 : vector<1x1x2x128xf32> to vector<2x128xf32>
    %c3_i32 = arith.constant 3 : i32
    %98 = vector.broadcast %c3_i32 : i32 to vector<2x128xi32>
    %99 = arith.cmpi eq, %7, %98 : vector<2x128xi32>
    %c0_112 = arith.constant 0 : index
    %c0_113 = arith.constant 0 : index
    %c3_114 = arith.constant 3 : index
    %c0_115 = arith.constant 0 : index
    %c0_116 = arith.constant 0 : index
    %100 = vector.load %arg5[%c0_112, %c0_113, %c3_114, %c0_115, %c0_116] : memref<1x1x4x2x128xf32, #tpu.memory_space<vmem>>, vector<1x1x1x2x128xf32>
    %101 = vector.shape_cast %100 : vector<1x1x1x2x128xf32> to vector<2x128xf32>
    %cst_117 = arith.constant 0.000000e+00 : f32
    %102 = vector.broadcast %cst_117 : f32 to vector<2x128xf32>
    %103 = arith.select %99, %97, %102 : vector<2x128xi1>, vector<2x128xf32>
    %104 = arith.addf %101, %103 : vector<2x128xf32>
    %c0_118 = arith.constant 0 : index
    %c0_119 = arith.constant 0 : index
    %c3_120 = arith.constant 3 : index
    %c0_121 = arith.constant 0 : index
    %c0_122 = arith.constant 0 : index
    %105 = vector.load %arg5[%c0_118, %c0_119, %c3_120, %c0_121, %c0_122] : memref<1x1x4x2x128xf32, #tpu.memory_space<vmem>>, vector<1x1x1x2x128xf32>
    %106 = vector.shape_cast %105 : vector<1x1x1x2x128xf32> to vector<2x128xf32>
    %107 = vector.shape_cast %104 : vector<2x128xf32> to vector<1x1x1x2x128xf32>
    tpu.vector_store %arg5[%c0_118, %c0_119, %c3_120, %c0_121, %c0_122], %107 {strides = array<i32>} : memref<1x1x4x2x128xf32, #tpu.memory_space<vmem>>, vector<1x1x1x2x128xf32>,
    %c0_123 = arith.constant 0 : index
    %c0_124 = arith.constant 0 : index
    %c3_125 = arith.constant 3 : index
    %c0_126 = arith.constant 0 : index
    %c0_127 = arith.constant 0 : index
    %108 = vector.load %arg6[%c0_123, %c0_124, %c3_125, %c0_126, %c0_127] : memref<1x1x4x2x128xf32, #tpu.memory_space<vmem>>, vector<1x1x1x2x128xf32>
    %109 = vector.shape_cast %108 : vector<1x1x1x2x128xf32> to vector<2x128xf32>
    %cst_128 = arith.constant 1.000000e+00 : f32
    %cst_129 = arith.constant 0.000000e+00 : f32
    %110 = vector.broadcast %cst_128 : f32 to vector<2x128xf32>
    %111 = vector.broadcast %cst_129 : f32 to vector<2x128xf32>
    %112 = arith.select %99, %110, %111 : vector<2x128xi1>, vector<2x128xf32>
    %113 = arith.addf %109, %112 : vector<2x128xf32>
    %c0_130 = arith.constant 0 : index
    %c0_131 = arith.constant 0 : index
    %c3_132 = arith.constant 3 : index
    %c0_133 = arith.constant 0 : index
    %c0_134 = arith.constant 0 : index
    %114 = vector.load %arg6[%c0_130, %c0_131, %c3_132, %c0_133, %c0_134] : memref<1x1x4x2x128xf32, #tpu.memory_space<vmem>>, vector<1x1x1x2x128xf32>
    %115 = vector.shape_cast %114 : vector<1x1x1x2x128xf32> to vector<2x128xf32>
    %116 = vector.shape_cast %113 : vector<2x128xf32> to vector<1x1x1x2x128xf32>
    tpu.vector_store %arg6[%c0_130, %c0_131, %c3_132, %c0_133, %c0_134], %116 {strides = array<i32>} : memref<1x1x4x2x128xf32, #tpu.memory_space<vmem>>, vector<1x1x1x2x128xf32>,
    %c0_135 = arith.constant 0 : index
    %c0_136 = arith.constant 0 : index
    %c3_137 = arith.constant 3 : index
    %c0_138 = arith.constant 0 : index
    %c0_139 = arith.constant 0 : index
    %117 = vector.load %arg7[%c0_135, %c0_136, %c3_137, %c0_138, %c0_139] : memref<1x1x4x2x128xf32, #tpu.memory_space<vmem>>, vector<1x1x1x2x128xf32>
    %118 = vector.shape_cast %117 : vector<1x1x1x2x128xf32> to vector<2x128xf32>
    %119 = arith.mulf %97, %97 : vector<2x128xf32>
    %120 = arith.addf %118, %119 : vector<2x128xf32>
    %c0_140 = arith.constant 0 : index
    %c0_141 = arith.constant 0 : index
    %c3_142 = arith.constant 3 : index
    %c0_143 = arith.constant 0 : index
    %c0_144 = arith.constant 0 : index
    %121 = vector.load %arg7[%c0_140, %c0_141, %c3_142, %c0_143, %c0_144] : memref<1x1x4x2x128xf32, #tpu.memory_space<vmem>>, vector<1x1x1x2x128xf32>
    %122 = vector.shape_cast %121 : vector<1x1x1x2x128xf32> to vector<2x128xf32>
    %123 = vector.shape_cast %120 : vector<2x128xf32> to vector<1x1x1x2x128xf32>
    tpu.vector_store %arg7[%c0_140, %c0_141, %c3_142, %c0_143, %c0_144], %123 {strides = array<i32>} : memref<1x1x4x2x128xf32, #tpu.memory_space<vmem>>, vector<1x1x1x2x128xf32>,
    %c1_i32_145 = arith.constant 1 : i32
    return
  }
  func.func @transform_0(%arg0: i32, %arg1: i32, %arg2: i32) -> (i32, i32, i32, i32) {
    %c1_i32 = arith.constant 1 : i32
    %0 = arith.muli %arg1, %c1_i32 : i32
    %1 = arith.addi %0, %arg2 : i32
    %c0_i32 = arith.constant 0 : i32
    %c0_i32_0 = arith.constant 0 : i32
    %c0_i32_1 = arith.constant 0 : i32
    return %arg0, %c0_i32, %1, %c0_i32_0 : i32, i32, i32, i32
  }
  func.func @transform_1(%arg0: i32, %arg1: i32, %arg2: i32) -> (i32, i32, i32) {
    %c1_i32 = arith.constant 1 : i32
    %0 = arith.muli %arg1, %c1_i32 : i32
    %1 = arith.addi %0, %arg2 : i32
    %c0_i32 = arith.constant 0 : i32
    %c0_i32_0 = arith.constant 0 : i32
    return %arg0, %1, %c0_i32 : i32, i32, i32
  }
  func.func @transform_2(%arg0: i32, %arg1: i32, %arg2: i32) -> (i32, i32, i32, i32, i32) {
    %c0_i32 = arith.constant 0 : i32
    %c0_i32_0 = arith.constant 0 : i32
    %c0_i32_1 = arith.constant 0 : i32
    %c0_i32_2 = arith.constant 0 : i32
    return %arg0, %arg1, %c0_i32, %c0_i32_0, %c0_i32_1 : i32, i32, i32, i32, i32
  }
  func.func @transform_3(%arg0: i32, %arg1: i32, %arg2: i32) -> (i32, i32, i32, i32, i32) {
    %c0_i32 = arith.constant 0 : i32
    %c0_i32_0 = arith.constant 0 : i32
    %c0_i32_1 = arith.constant 0 : i32
    %c0_i32_2 = arith.constant 0 : i32
    return %arg0, %arg1, %c0_i32, %c0_i32_0, %c0_i32_1 : i32, i32, i32, i32, i32
  }
  func.func @transform_4(%arg0: i32, %arg1: i32, %arg2: i32) -> (i32, i32, i32, i32, i32) {
    %c0_i32 = arith.constant 0 : i32
    %c0_i32_0 = arith.constant 0 : i32
    %c0_i32_1 = arith.constant 0 : i32
    %c0_i32_2 = arith.constant 0 : i32
    return %arg0, %arg1, %c0_i32, %c0_i32_0, %c0_i32_1 : i32, i32, i32, i32, i32
  }
}

</mosaic_0001>

<llo_original>
// kernel: dice_loss.1
$region0: #{dice_loss.1}
  #allocation0 [shape = 'u32[]', space=smem, size = 0x4, offset = 0x4, fixed_abs, tag = 'smem constant byte address 0x4 - core index']
  #allocation1 [shape = 'u32[144,128]{1,0:T(1,128)}', space=vmem, size = 0x12000, scoped, tag = 'internal scratch']
  %s0 = inlined_call_operand.vmem [shape: f32[2,4,2,128], index: 0, kind: input, shape index: {}]
  %s1 = inlined_call_operand.vmem [shape: s32[2,2,128], index: 1, kind: input, shape index: {}]
  %s2 = inlined_call_operand.vmem [shape: f32[2,1,4,2,128], index: 2, kind: output, shape index: {0}]
  %s3 = inlined_call_operand.vmem [shape: f32[2,1,4,2,128], index: 3, kind: output, shape index: {1}]
  %s4 = inlined_call_operand.vmem [shape: f32[2,1,4,2,128], index: 4, kind: output, shape index: {2}]
  %5 = xla_tuple %s2, %s3, %s4
  %s6 = sld [smem:[#allocation0]]
  $region61: #{dice_loss.1} parent=0
    _
  %s8 = ssub.s32 1, %s6
  %s9 = scalar_select 0, %s8, %s6
  loop: start=0, step=1, limit=4
  $region2: #{dice_loss.1} parent=0 // loop_pre_header
    _
  $region3: #{dice_loss.1} parent=0 // loop_header
    %s11 = sphi 0, %s15
    %p12 = scmp.ge.s32.totalorder %s11, 4
    %s18 = sphi 0, %s37
    %s19 = sphi 0, %s33
    %s20 = sphi 0, %s29
    %s21 = sphi 0, %s18
    %s22 = sphi 0, %s19
    %s23 = sphi 0, %s20
    %s24 = sphi 0, %s21
    %s25 = sphi 0, %s22
    %s26 = sphi 0, %s23
    %s44 = sphi 0, %s46
    %s47 = sphi 0, %s44
    %s48 = sphi 0, %s47
    %s64 = sphi 0, %s48
    %s74 = sphi 0, %s76
    %s77 = sphi 0, %s74
    %s78 = sphi 0, %s77
    %s94 = sphi 0, %s78
    %s102 = sphi 0, %s104
    %s105 = sphi 0, %s102
    %s106 = sphi 0, %s105
    %s122 = sphi 0, %s106
    %s130 = sphi 0, %s132
    %s133 = sphi 0, %s130
    %s134 = sphi 0, %s133
    %s150 = sphi 0, %s134
    %s158 = sphi 0, %s160
    %s161 = sphi 0, %s158
    %s162 = sphi 0, %s161
    %s178 = sphi 0, %s162
  $region4: #{dice_loss.1} parent=0 // loop_header_branch
    %14 = sbr.rel (%p12) target = $region8
  $region5: #{dice_loss.1} parent=0 // loop_body
    %s16 = ssub.s32 %s11, 1
    %s17 = ssub.s32 %s11, 2
    %s27 = sadd.s32 1, %s20
    %p28 = scmp.ge.s32.totalorder %s27, 1
    %s29 = scalar_select %p28, 0, %s27
    %s30 = sadd.s32 1, %s19
    %s31 = scalar_select %p28, %s30, %s19
    %p32 = scmp.ge.s32.totalorder %s31, 1
    %s33 = scalar_select %p32, 0, %s31
    %s34 = sadd.s32 1, %s18
    %s35 = scalar_select %p32, %s34, %s18
    %p36 = scmp.ge.s32.totalorder %s35, 2
    %s37 = scalar_select %p36, 0, %s35
    %s38 = sadd.s32 %s19, %s20
    %s39 = sadd.s32 %s33, %s29
    %s40 = ssub.s32 %s18, %s37
    %s41 = ssub.s32 %s38, %s39
    %s42 = sor.u32 %s40, %s41
    %p43 = scmp.eq.s32.totalorder %s42, 0
    %s45 = sadd.s32 %s44, 1
    %s46 = scalar_select %p43, %s44, %s45
    %p49 = pneg %p43
    %p50 = scmp.eq.s32.totalorder %s11, 1
    %p51 = por %p49, %p50
    %p52 = scmp.ne.s32.totalorder %s44, %s47
    %p53 = scmp.eq.s32.totalorder %s11, 0
    %p54 = por %p52, %p53
    %p55 = scmp.ne.s32.totalorder %s44, %s47
    %p56 = scmp.eq.s32.totalorder %s16, 1
    %p57 = por %p55, %p56
    %p58 = scmp.ne.s32.totalorder %s47, %s48
    %p59 = scmp.eq.s32.totalorder %s16, 0
    %p60 = por %p58, %p59
    %p61 = scmp.ne.s32.totalorder %s47, %s48
    %p62 = scmp.eq.s32.totalorder %s17, 1
    %p63 = por %p61, %p62
    %p65 = scmp.ne.s32.totalorder %s48, %s64
    %p66 = scmp.eq.s32.totalorder %s17, 0
    %p67 = por %p65, %p66
    %s68 = sadd.s32 %s19, %s20
    %s69 = sadd.s32 %s33, %s29
    %s70 = ssub.s32 %s18, %s37
    %s71 = ssub.s32 %s68, %s69
    %s72 = sor.u32 %s70, %s71
    %p73 = scmp.eq.s32.totalorder %s72, 0
    %s75 = sadd.s32 %s74, 1
    %s76 = scalar_select %p73, %s74, %s75
    %p79 = pneg %p73
    %p80 = scmp.eq.s32.totalorder %s11, 1
    %p81 = por %p79, %p80
    %p82 = scmp.ne.s32.totalorder %s74, %s77
    %p83 = scmp.eq.s32.totalorder %s11, 0
    %p84 = por %p82, %p83
    %p85 = scmp.ne.s32.totalorder %s74, %s77
    %p86 = scmp.eq.s32.totalorder %s16, 1
    %p87 = por %p85, %p86
    %p88 = scmp.ne.s32.totalorder %s77, %s78
    %p89 = scmp.eq.s32.totalorder %s16, 0
    %p90 = por %p88, %p89
    %p91 = scmp.ne.s32.totalorder %s77, %s78
    %p92 = scmp.eq.s32.totalorder %s17, 1
    %p93 = por %p91, %p92
    %p95 = scmp.ne.s32.totalorder %s78, %s94
    %p96 = scmp.eq.s32.totalorder %s17, 0
    %p97 = por %p95, %p96
    %s98 = ssub.s32 %s18, %s37
    %s99 = ssub.s32 %s19, %s33
    %s100 = sor.u32 %s98, %s99
    %p101 = scmp.eq.s32.totalorder %s100, 0
    %s103 = sadd.s32 %s102, 1
    %s104 = scalar_select %p101, %s102, %s103
    %p107 = pneg %p101
    %p108 = scmp.eq.s32.totalorder %s11, 1
    %p109 = por %p107, %p108
    %p110 = scmp.ne.s32.totalorder %s102, %s105
    %p111 = scmp.eq.s32.totalorder %s11, 0
    %p112 = por %p110, %p111
    %p113 = scmp.ne.s32.totalorder %s102, %s105
    %p114 = scmp.eq.s32.totalorder %s16, 1
    %p115 = por %p113, %p114
    %p116 = scmp.ne.s32.totalorder %s105, %s106
    %p117 = scmp.eq.s32.totalorder %s16, 0
    %p118 = por %p116, %p117
    %p119 = scmp.ne.s32.totalorder %s105, %s106
    %p120 = scmp.eq.s32.totalorder %s17, 1
    %p121 = por %p119, %p120
    %p123 = scmp.ne.s32.totalorder %s106, %s122
    %p124 = scmp.eq.s32.totalorder %s17, 0
    %p125 = por %p123, %p124
    %s126 = ssub.s32 %s18, %s37
    %s127 = ssub.s32 %s19, %s33
    %s128 = sor.u32 %s126, %s127
    %p129 = scmp.eq.s32.totalorder %s128, 0
    %s131 = sadd.s32 %s130, 1
    %s132 = scalar_select %p129, %s130, %s131
    %p135 = pneg %p129
    %p136 = scmp.eq.s32.totalorder %s11, 1
    %p137 = por %p135, %p136
    %p138 = scmp.ne.s32.totalorder %s130, %s133
    %p139 = scmp.eq.s32.totalorder %s11, 0
    %p140 = por %p138, %p139
    %p141 = scmp.ne.s32.totalorder %s130, %s133
    %p142 = scmp.eq.s32.totalorder %s16, 1
    %p143 = por %p141, %p142
    %p144 = scmp.ne.s32.totalorder %s133, %s134
    %p145 = scmp.eq.s32.totalorder %s16, 0
    %p146 = por %p144, %p145
    %p147 = scmp.ne.s32.totalorder %s133, %s134
    %p148 = scmp.eq.s32.totalorder %s17, 1
    %p149 = por %p147, %p148
    %p151 = scmp.ne.s32.totalorder %s134, %s150
    %p152 = scmp.eq.s32.totalorder %s17, 0
    %p153 = por %p151, %p152
    %s154 = ssub.s32 %s18, %s37
    %s155 = ssub.s32 %s19, %s33
    %s156 = sor.u32 %s154, %s155
    %p157 = scmp.eq.s32.totalorder %s156, 0
    %s159 = sadd.s32 %s158, 1
    %s160 = scalar_select %p157, %s158, %s159
    %p163 = pneg %p157
    %p164 = scmp.eq.s32.totalorder %s11, 1
    %p165 = por %p163, %p164
    %p166 = scmp.ne.s32.totalorder %s158, %s161
    %p167 = scmp.eq.s32.totalorder %s11, 0
    %p168 = por %p166, %p167
    %p169 = scmp.ne.s32.totalorder %s158, %s161
    %p170 = scmp.eq.s32.totalorder %s16, 1
    %p171 = por %p169, %p170
    %p172 = scmp.ne.s32.totalorder %s161, %s162
    %p173 = scmp.eq.s32.totalorder %s16, 0
    %p174 = por %p172, %p173
    %p175 = scmp.ne.s32.totalorder %s161, %s162
    %p176 = scmp.eq.s32.totalorder %s17, 1
    %p177 = por %p175, %p176
    %p179 = scmp.ne.s32.totalorder %s162, %s178
    %p180 = scmp.eq.s32.totalorder %s17, 0
    %p181 = por %p179, %p180
    %p182 = scmp.le.s32.totalorder 1, %s11
    %p183 = scmp.lt.s32.totalorder %s11, 3
    %p184 = pnand %p182, %p183
    %p185 = pneg %p184
    // Predicated region
    $region9: #{dice_loss.1} parent=5 // pred_check
      _
    $region10: #{dice_loss.1} parent=5 // pred_check_branch
      %187 = sbr.rel (%p184) target = $region12
    $region11: #{dice_loss.1} parent=5 // pred_region
      %s188 = ssub.s32 %s11, 1
    $region12: #{dice_loss.1} parent=5 // pred_fallthru
      _
    %p189 = scmp.lt.s32.totalorder %s11, 2
    // Predicated region
    $region13: #{dice_loss.1} parent=5 // pred_check
      %p190 = pneg %p189
    $region14: #{dice_loss.1} parent=5 // pred_check_branch
      %192 = sbr.rel (%p190) target = $region16
    $region15: #{dice_loss.1} parent=5 // pred_region
      // Predicated region
      $region17: #{dice_loss.1} parent=15 // pred_check
        %p193 = pneg %p54
      $region18: #{dice_loss.1} parent=15 // pred_check_branch
        %195 = sbr.rel (%p193) target = $region20
      $region19: #{dice_loss.1} parent=15 // pred_region
        %s196 = sadd.s32 %s19, %s20
        %p197 = scmp.lt.s32.totalorder %s18, 1
        %s198 = scalar_select %p197, %s18, 1
        %p199 = scmp.lt.s32.totalorder %s196, 0
        %s200 = scalar_select %p199, %s196, 0
        %s201 = smul.addr %s198, 4
        %s202 = sadd.s32 %s200, %s201
        %s203 = smul.addr %s202, 2
        %s204 = scalar_lea.vmem %s0, %s203
        %s205 = sadd.s32 %s19, %s20
      $region20: #{dice_loss.1} parent=15 // pred_fallthru
        _
      // Predicated region
      $region21: #{dice_loss.1} parent=15 // pred_check
        %p206 = pneg %p84
      $region22: #{dice_loss.1} parent=15 // pred_check_branch
        %208 = sbr.rel (%p206) target = $region24
      $region23: #{dice_loss.1} parent=15 // pred_region
        %s209 = sadd.s32 %s19, %s20
        %p210 = scmp.lt.s32.totalorder %s18, 1
        %s211 = scalar_select %p210, %s18, 1
        %p212 = scmp.lt.s32.totalorder %s209, 0
        %s213 = scalar_select %p212, %s209, 0
        %s214 = sadd.s32 %s213, %s211
        %s215 = smul.addr %s214, 2
        %s216 = scalar_lea.vmem %s1, %s215
        %s217 = sadd.s32 %s19, %s20
      $region24: #{dice_loss.1} parent=15 // pred_fallthru
        _
    $region16: #{dice_loss.1} parent=5 // pred_fallthru
      _
    %p218 = scmp.le.s32.totalorder 1, %s11
    %p219 = scmp.lt.s32.totalorder %s11, 3
    %p220 = pnand %p218, %p219
    %p221 = pneg %p220
    // Predicated region
    $region25: #{dice_loss.1} parent=5 // pred_check
      _
    $region26: #{dice_loss.1} parent=5 // pred_check_branch
      %223 = sbr.rel (%p220) target = $region28
    $region27: #{dice_loss.1} parent=5 // pred_region
      %s224 = ssub.s32 %s11, 1
      %s225 = sadd.s32 %s22, %s23
      %p226 = scmp.lt.s32.totalorder %s21, 1
      %s227 = scalar_select %p226, %s21, 1
      %p228 = scmp.lt.s32.totalorder %s225, 0
      %s229 = scalar_select %p228, %s225, 0
      %s230 = smul.addr %s227, 4
      %s231 = sadd.s32 %s229, %s230
      %s232 = smul.addr %s231, 2
      %s233 = scalar_lea.vmem %s0, %s232
      %p234 = pneg %p60
      %p235 = pneg %p57
      %s236 = sadd.s32 %s22, %s23
      %p237 = scmp.lt.s32.totalorder %s21, 1
      %s238 = scalar_select %p237, %s21, 1
      %p239 = scmp.lt.s32.totalorder %s236, 0
      %s240 = scalar_select %p239, %s236, 0
      %s241 = sadd.s32 %s240, %s238
      %s242 = smul.addr %s241, 2
      %s243 = scalar_lea.vmem %s1, %s242
      %p244 = pneg %p90
      %p245 = pneg %p87
      %p246 = pneg %p118
      %p247 = pneg %p115
      %p248 = scmp.lt.s32.totalorder %s21, 1
      %s249 = scalar_select %p248, %s21, 1
      %p250 = scmp.lt.s32.totalorder %s22, 0
      %s251 = scalar_select %p250, %s22, 0
      %s252 = smul.addr %s251, 4
      %s253 = smul.addr %s249, 4
      %s254 = sadd.s32 %s252, %s253
      %s255 = smul.addr %s254, 2
      %s256 = scalar_lea.vmem %s2, %s255
      %p257 = pneg %p146
      %p258 = pneg %p143
      %p259 = scmp.lt.s32.totalorder %s21, 1
      %s260 = scalar_select %p259, %s21, 1
      %p261 = scmp.lt.s32.totalorder %s22, 0
      %s262 = scalar_select %p261, %s22, 0
      %s263 = smul.addr %s262, 4
      %s264 = smul.addr %s260, 4
      %s265 = sadd.s32 %s263, %s264
      %s266 = smul.addr %s265, 2
      %s267 = scalar_lea.vmem %s3, %s266
      %p268 = pneg %p174
      %p269 = pneg %p171
      %p270 = scmp.lt.s32.totalorder %s21, 1
      %s271 = scalar_select %p270, %s21, 1
      %p272 = scmp.lt.s32.totalorder %s22, 0
      %s273 = scalar_select %p272, %s22, 0
      %s274 = smul.addr %s273, 4
      %s275 = smul.addr %s271, 4
      %s276 = sadd.s32 %s274, %s275
      %s277 = smul.addr %s276, 2
      %s278 = scalar_lea.vmem %s4, %s277
      %s279 = sadd.s32 %s22, %s23
      %p280 = scmp.lt.s32.totalorder %s21, 1
      %s281 = scalar_select %p280, %s21, 1
      %p282 = scmp.lt.s32.totalorder %s279, 0
      %s283 = scalar_select %p282, %s279, 0
      %s284 = smul.addr %s281, 4
      %s285 = sadd.s32 %s283, %s284
      %s286 = smul.addr %s285, 2
      %s287 = scalar_lea.vmem %s0, %s286
      %s288 = sadd.s32 %s22, %s23
      %s289 = sadd.s32 %s22, %s23
      %p290 = scmp.lt.s32.totalorder %s21, 1
      %s291 = scalar_select %p290, %s21, 1
      %p292 = scmp.lt.s32.totalorder %s289, 0
      %s293 = scalar_select %p292, %s289, 0
      %s294 = sadd.s32 %s293, %s291
      %s295 = smul.addr %s294, 2
      %s296 = scalar_lea.vmem %s1, %s295
      %s297 = sadd.s32 %s22, %s23
      %p298 = scmp.lt.s32.totalorder %s21, 1
      %s299 = scalar_select %p298, %s21, 1
      %p300 = scmp.lt.s32.totalorder %s22, 0
      %s301 = scalar_select %p300, %s22, 0
      %s302 = smul.addr %s301, 4
      %s303 = smul.addr %s299, 4
      %s304 = sadd.s32 %s302, %s303
      %s305 = smul.addr %s304, 2
      %s306 = scalar_lea.vmem %s2, %s305
      %p307 = scmp.lt.s32.totalorder %s21, 1
      %s308 = scalar_select %p307, %s21, 1
      %p309 = scmp.lt.s32.totalorder %s22, 0
      %s310 = scalar_select %p309, %s22, 0
      %s311 = smul.addr %s310, 4
      %s312 = smul.addr %s308, 4
      %s313 = sadd.s32 %s311, %s312
      %s314 = smul.addr %s313, 2
      %s315 = scalar_lea.vmem %s3, %s314
      %p316 = scmp.lt.s32.totalorder %s21, 1
      %s317 = scalar_select %p316, %s21, 1
      %p318 = scmp.lt.s32.totalorder %s22, 0
      %s319 = scalar_select %p318, %s22, 0
      %s320 = smul.addr %s319, 4
      %s321 = smul.addr %s317, 4
      %s322 = sadd.s32 %s320, %s321
      %s323 = smul.addr %s322, 2
      %s324 = scalar_lea.vmem %s4, %s323
      %p325 = scmp.eq.s32.totalorder %s23, 0
      // Predicated region
      $region29: #{dice_loss.1} parent=27 // pred_check
        %p326 = pneg %p325
      $region30: #{dice_loss.1} parent=27 // pred_check_branch
        %328 = sbr.rel (%p326) target = $region32
      $region31: #{dice_loss.1} parent=27 // pred_region
        %329 = vst [vmem:[%s306] sm:$0x3] 0.0
        %330 = vst [vmem:[%s306 + $0x2] sm:$0x3] 0.0
        %331 = vst [vmem:[%s306 + $0x4] sm:$0x3] 0.0
        %332 = vst [vmem:[%s306 + $0x6] sm:$0x3] 0.0
        %333 = vst [vmem:[%s315] sm:$0x3] 0.0
        %334 = vst [vmem:[%s315 + $0x2] sm:$0x3] 0.0
        %335 = vst [vmem:[%s315 + $0x4] sm:$0x3] 0.0
        %336 = vst [vmem:[%s315 + $0x6] sm:$0x3] 0.0
        %337 = vst [vmem:[%s324] sm:$0x3] 0.0
        %338 = vst [vmem:[%s324 + $0x2] sm:$0x3] 0.0
        %339 = vst [vmem:[%s324 + $0x4] sm:$0x3] 0.0
        %340 = vst [vmem:[%s324 + $0x6] sm:$0x3] 0.0
      $region32: #{dice_loss.1} parent=27 // pred_fallthru
        _
      %v341 = vld [vmem:[%s296] sm:$0x3]
      %v342 = vld [vmem:[%s287] sm:$0x3]
      %vm343 = vcmp.eq.s32.totalorder %v341, 0
      %v344 = vld [vmem:[%s306] sm:$0x3]
      %v345 = vsel %vm343, %v342, 0.0
      %v346 = vadd.f32 %v344, %v345
      %347 = vst [vmem:[%s306] sm:$0x3] %v346
      %v348 = vld [vmem:[%s315] sm:$0x3]
      %v349 = vsel %vm343, 1.0, 0.0
      %v350 = vadd.f32 %v348, %v349
      %351 = vst [vmem:[%s315] sm:$0x3] %v350
      %v352 = vld [vmem:[%s324] sm:$0x3]
      %v353 = vmul.f32 %v342, %v342
      %v354 = vadd.f32 %v352, %v353
      %355 = vst [vmem:[%s324] sm:$0x3] %v354
      %s356 = sadd.s32 0, 2
      %s357 = scalar_lea.vmem %s287, %s356
      %v358 = vld [vmem:[%s357] sm:$0x3]
      %vm359 = vcmp.eq.s32.totalorder %v341, 1
      %s360 = scalar_lea.vmem %s306, 2
      %v361 = vld [vmem:[%s360] sm:$0x3]
      %v362 = vsel %vm359, %v358, 0.0
      %v363 = vadd.f32 %v361, %v362
      %364 = vst [vmem:[%s360] sm:$0x3] %v363
      %s365 = scalar_lea.vmem %s315, 2
      %v366 = vld [vmem:[%s365] sm:$0x3]
      %v367 = vsel %vm359, 1.0, 0.0
      %v368 = vadd.f32 %v366, %v367
      %369 = vst [vmem:[%s365] sm:$0x3] %v368
      %s370 = scalar_lea.vmem %s324, 2
      %v371 = vld [vmem:[%s370] sm:$0x3]
      %v372 = vmul.f32 %v358, %v358
      %v373 = vadd.f32 %v371, %v372
      %374 = vst [vmem:[%s370] sm:$0x3] %v373
      %s375 = sadd.s32 0, 4
      %s376 = scalar_lea.vmem %s287, %s375
      %v377 = vld [vmem:[%s376] sm:$0x3]
      %vm378 = vcmp.eq.s32.totalorder %v341, 2
      %s379 = scalar_lea.vmem %s306, 4
      %v380 = vld [vmem:[%s379] sm:$0x3]
      %v381 = vsel %vm378, %v377, 0.0
      %v382 = vadd.f32 %v380, %v381
      %383 = vst [vmem:[%s379] sm:$0x3] %v382
      %s384 = scalar_lea.vmem %s315, 4
      %v385 = vld [vmem:[%s384] sm:$0x3]
      %v386 = vsel %vm378, 1.0, 0.0
      %v387 = vadd.f32 %v385, %v386
      %388 = vst [vmem:[%s384] sm:$0x3] %v387
      %s389 = scalar_lea.vmem %s324, 4
      %v390 = vld [vmem:[%s389] sm:$0x3]
      %v391 = vmul.f32 %v377, %v377
      %v392 = vadd.f32 %v390, %v391
      %393 = vst [vmem:[%s389] sm:$0x3] %v392
      %s394 = sadd.s32 0, 6
      %s395 = scalar_lea.vmem %s287, %s394
      %v396 = vld [vmem:[%s395] sm:$0x3]
      %vm397 = vcmp.eq.s32.totalorder %v341, 3
      %s398 = scalar_lea.vmem %s306, 6
      %v399 = vld [vmem:[%s398] sm:$0x3]
      %v400 = vsel %vm397, %v396, 0.0
      %v401 = vadd.f32 %v399, %v400
      %402 = vst [vmem:[%s398] sm:$0x3] %v401
      %s403 = scalar_lea.vmem %s315, 6
      %v404 = vld [vmem:[%s403] sm:$0x3]
      %v405 = vsel %vm397, 1.0, 0.0
      %v406 = vadd.f32 %v404, %v405
      %407 = vst [vmem:[%s403] sm:$0x3] %v406
      %s408 = scalar_lea.vmem %s324, 6
      %v409 = vld [vmem:[%s408] sm:$0x3]
      %v410 = vmul.f32 %v396, %v396
      %v411 = vadd.f32 %v409, %v410
      %412 = vst [vmem:[%s408] sm:$0x3] %v411
      %p413 = scmp.lt.s32.totalorder %s21, 1
      %s414 = scalar_select %p413, %s21, 1
      %p415 = scmp.lt.s32.totalorder %s22, 0
      %s416 = scalar_select %p415, %s22, 0
      %s417 = smul.addr %s416, 4
      %s418 = smul.addr %s414, 4
      %s419 = sadd.s32 %s417, %s418
      %s420 = smul.addr %s419, 2
      %s421 = scalar_lea.vmem %s2, %s420
      %p422 = scmp.lt.s32.totalorder %s21, 1
      %s423 = scalar_select %p422, %s21, 1
      %p424 = scmp.lt.s32.totalorder %s22, 0
      %s425 = scalar_select %p424, %s22, 0
      %s426 = smul.addr %s425, 4
      %s427 = smul.addr %s423, 4
      %s428 = sadd.s32 %s426, %s427
      %s429 = smul.addr %s428, 2
      %s430 = scalar_lea.vmem %s3, %s429
      %p431 = scmp.lt.s32.totalorder %s21, 1
      %s432 = scalar_select %p431, %s21, 1
      %p433 = scmp.lt.s32.totalorder %s22, 0
      %s434 = scalar_select %p433, %s22, 0
      %s435 = smul.addr %s434, 4
      %s436 = smul.addr %s432, 4
      %s437 = sadd.s32 %s435, %s436
      %s438 = smul.addr %s437, 2
      %s439 = scalar_lea.vmem %s4, %s438
      // Predicated region
      $region33: #{dice_loss.1} parent=27 // pred_check
        %p440 = pneg %p115
      $region34: #{dice_loss.1} parent=27 // pred_check_branch
        %442 = sbr.rel (%p440) target = $region36
      $region35: #{dice_loss.1} parent=27 // pred_region
        _
      $region36: #{dice_loss.1} parent=27 // pred_fallthru
        _
      // Predicated region
      $region37: #{dice_loss.1} parent=27 // pred_check
        %p443 = pneg %p143
      $region38: #{dice_loss.1} parent=27 // pred_check_branch
        %445 = sbr.rel (%p443) target = $region40
      $region39: #{dice_loss.1} parent=27 // pred_region
        _
      $region40: #{dice_loss.1} parent=27 // pred_fallthru
        _
      // Predicated region
      $region41: #{dice_loss.1} parent=27 // pred_check
        %p446 = pneg %p171
      $region42: #{dice_loss.1} parent=27 // pred_check_branch
        %448 = sbr.rel (%p446) target = $region44
      $region43: #{dice_loss.1} parent=27 // pred_region
        _
      $region44: #{dice_loss.1} parent=27 // pred_fallthru
        _
    $region28: #{dice_loss.1} parent=5 // pred_fallthru
      _
    %p449 = scmp.le.s32.totalorder 2, %s11
    // Predicated region
    $region45: #{dice_loss.1} parent=5 // pred_check
      %p450 = pneg %p449
    $region46: #{dice_loss.1} parent=5 // pred_check_branch
      %452 = sbr.rel (%p450) target = $region48
    $region47: #{dice_loss.1} parent=5 // pred_region
      %s453 = ssub.s32 %s11, 2
      // Predicated region
      $region49: #{dice_loss.1} parent=47 // pred_check
        %p454 = pneg %p121
      $region50: #{dice_loss.1} parent=47 // pred_check_branch
        %456 = sbr.rel (%p454) target = $region52
      $region51: #{dice_loss.1} parent=47 // pred_region
        %p457 = scmp.lt.s32.totalorder %s24, 1
        %s458 = scalar_select %p457, %s24, 1
        %p459 = scmp.lt.s32.totalorder %s25, 0
        %s460 = scalar_select %p459, %s25, 0
        %s461 = smul.addr %s460, 4
        %s462 = smul.addr %s458, 4
        %s463 = sadd.s32 %s461, %s462
        %s464 = smul.addr %s463, 2
        %s465 = scalar_lea.vmem %s2, %s464
      $region52: #{dice_loss.1} parent=47 // pred_fallthru
        _
      // Predicated region
      $region53: #{dice_loss.1} parent=47 // pred_check
        %p466 = pneg %p149
      $region54: #{dice_loss.1} parent=47 // pred_check_branch
        %468 = sbr.rel (%p466) target = $region56
      $region55: #{dice_loss.1} parent=47 // pred_region
        %p469 = scmp.lt.s32.totalorder %s24, 1
        %s470 = scalar_select %p469, %s24, 1
        %p471 = scmp.lt.s32.totalorder %s25, 0
        %s472 = scalar_select %p471, %s25, 0
        %s473 = smul.addr %s472, 4
        %s474 = smul.addr %s470, 4
        %s475 = sadd.s32 %s473, %s474
        %s476 = smul.addr %s475, 2
        %s477 = scalar_lea.vmem %s3, %s476
      $region56: #{dice_loss.1} parent=47 // pred_fallthru
        _
      // Predicated region
      $region57: #{dice_loss.1} parent=47 // pred_check
        %p478 = pneg %p177
      $region58: #{dice_loss.1} parent=47 // pred_check_branch
        %480 = sbr.rel (%p478) target = $region60
      $region59: #{dice_loss.1} parent=47 // pred_region
        %p481 = scmp.lt.s32.totalorder %s24, 1
        %s482 = scalar_select %p481, %s24, 1
        %p483 = scmp.lt.s32.totalorder %s25, 0
        %s484 = scalar_select %p483, %s25, 0
        %s485 = smul.addr %s484, 4
        %s486 = smul.addr %s482, 4
        %s487 = sadd.s32 %s485, %s486
        %s488 = smul.addr %s487, 2
        %s489 = scalar_lea.vmem %s4, %s488
      $region60: #{dice_loss.1} parent=47 // pred_fallthru
        _
    $region48: #{dice_loss.1} parent=5 // pred_fallthru
      _
  $region6: #{dice_loss.1} parent=0 // loop_footer
    %s15 = sadd.s32 1, %s11
  $region7: #{dice_loss.1} parent=0 // loop_footer_branch
    %10 = sbr.rel target = $region3
  $region8: #{dice_loss.1} parent=0 // loop_exit
    _

</llo_original>
